<compile_context>
chip_gen: v7x
topology: tpu7x:2x2x1
jax: 0.10.0
libtpu: 0.0.40
codegen_flags: <defaults>
</compile_context>

<pallas_src>
import functools
import math

import numpy as np

import jax
import jax.numpy as jnp
from jax import lax
from jax.experimental import pallas as pl
from jax.experimental.pallas import tpu as pltpu

_LOG_SQRT_2PI = math.log(math.sqrt(2.0 * math.pi))
_VMEM_LIMIT = 32 * 1024 * 1024


def _round_up(v, m):
    return ((v + m - 1) // m) * m


# ----------------------------------------------------------------------------
# Pallas kernels
# ----------------------------------------------------------------------------
def _mm_scale_shift_kernel(x_ref, w_ref, s_ref, t_ref, o_ref, acc_ref, *, relu):
    """Tiled matmul with folded BN scale/shift and optional ReLU.

    x: (tm, tk) bf16, w: (tk, tn) bf16, s/t: (1, tn) f32, out: (tm, tn)."""
    @pl.when(pl.program_id(2) == 0)
    def _():
        acc_ref[...] = jnp.zeros_like(acc_ref)

    acc_ref[...] += jnp.dot(x_ref[...], w_ref[...],
                            preferred_element_type=jnp.float32)

    @pl.when(pl.program_id(2) == pl.num_programs(2) - 1)
    def _():
        y = acc_ref[...] * s_ref[...] + t_ref[...]
        if relu:
            y = jnp.maximum(y, 0.0)
        o_ref[...] = y.astype(o_ref.dtype)


def _conv3x3_kernel(x_ref, w_ref, s_ref, t_ref, o_ref, *, relu):
    """Direct 3x3 stride-1 conv (pad=1) for one camera, NHWC, tap accumulation.

    x: (1, H+2, W+2, Cin) bf16 ; w: (9, Cin, Cout) bf16 ; s/t: (1, Cout) f32
    out: (1, H, W, Cout).  No im2col copy: taps are shifted slices of the ref."""
    H = o_ref.shape[1]
    W = o_ref.shape[2]
    Cout = o_ref.shape[3]
    s = s_ref[...]
    t = t_ref[...]
    for h in range(H):
        acc = jnp.zeros((W, Cout), jnp.float32)
        for di in range(3):
            for dj in range(3):
                xs = x_ref[0, h + di, dj:dj + W, :]          # (W, Cin) bf16
                acc = acc + jnp.dot(xs, w_ref[di * 3 + dj],
                                    preferred_element_type=jnp.float32)
        y = acc * s + t
        if relu:
            y = jnp.maximum(y, 0.0)
        o_ref[0, h] = y.astype(o_ref.dtype)


def _pdf_kernel(x01_ref, dref_ref, pdf_ref, *, d0, d1, dstep, norm_loc, norm_scale):
    """Per-camera depth distribution (Normal pdf over the D bins).

    x01: (1, 2, HW) raw depthnet ch 0:2 ; dref: (1, 1, HW) pooled ground depth
    out: (1, D, HW)."""
    D = pdf_ref.shape[1]
    x01 = x01_ref[...]
    dref = dref_ref[...]

    loc = jax.nn.sigmoid(x01[0, 0:1, :]) * norm_loc - norm_loc * 0.5 + dref[0]
    loc = jnp.clip(loc, d0, d1)                               # (1, HW)
    scale = jnp.clip(jax.nn.sigmoid(x01[0, 1:2, :]) * norm_scale, 1e-6, d1 - d0)
    inv_scale = pl.reciprocal(scale, approx=True)             # EUP slot

    ds = d0 + dstep * lax.broadcasted_iota(jnp.float32, (D, 1), 0)   # (D, 1)
    z = (ds - loc) * inv_scale                                 # (D, HW)
    logp = -0.5 * z * z - jnp.log(scale) - _LOG_SQRT_2PI
    pdf_ref[...] = jnp.exp(logp)[None]


def _bev_scatter_kernel(vidx_ref, pdf_ref, feat_ref, o_ref):
    """Fused LSS outer-product + voxel scatter-add.

    vidx: (D, tp) int32 flat voxel index (-1 => dropped), pdf: (D, tp) f32,
    feat: (tp, C) bf16, out: (tv, C) f32 accumulated across the pixel-tile axis.
    vox[v, c] = sum_{d, p} pdf[d, p] * [vidx[d, p] == v] * feat[p, c]."""
    j = pl.program_id(1)

    @pl.when(j == 0)
    def _():
        o_ref[...] = jnp.zeros_like(o_ref)

    D, tp = vidx_ref.shape
    tv = o_ref.shape[0]
    base = pl.program_id(0) * tv
    vox_ids = base + lax.broadcasted_iota(jnp.int32, (tv, 1), 0)      # (tv, 1)

    w = jnp.zeros((tv, tp), jnp.float32)
    for d in range(D):
        match = vidx_ref[d:d + 1, :] == vox_ids                       # (tv, tp)
        w = w + jnp.where(match, pdf_ref[d:d + 1, :], 0.0)

    o_ref[...] += jnp.dot(w.astype(jnp.bfloat16), feat_ref[...],
                          preferred_element_type=jnp.float32)


# ----------------------------------------------------------------------------
# Kernel wrappers
# ----------------------------------------------------------------------------
def _fold_bn(b, bn, cout):
    if bn is None:
        return jnp.ones((cout,), jnp.float32), b.astype(jnp.float32)
    gamma, beta, mean, var = bn
    s = gamma / jnp.sqrt(var + 1e-5)
    t = beta - mean * s + b * s
    return s.astype(jnp.float32), t.astype(jnp.float32)


def _matmul_scale_shift(x, w, scale, shift, relu, out_dtype=jnp.float32):
    """y = act((x @ w) * scale + shift), gridded bf16 Pallas matmul."""
    M, K = x.shape
    _, N = w.shape

    tm = 256 if M > 512 else _round_up(M, 8)
    if K <= 1024:
        tk = _round_up(K, 8)
    else:
        tk = 512
    tn = 256 if N > 512 else N
    Mp, Kp, Np = _round_up(M, tm), _round_up(K, tk), _round_up(N, tn)

    xb = x.astype(jnp.bfloat16)
    wb = w.astype(jnp.bfloat16)
    if (Mp, Kp) != (M, K):
        xb = jnp.pad(xb, ((0, Mp - M), (0, Kp - K)))
    if (Kp, Np) != (K, N):
        wb = jnp.pad(wb, ((0, Kp - K), (0, Np - N)))
    s = scale.reshape(1, N).astype(jnp.float32)
    t = shift.reshape(1, N).astype(jnp.float32)
    if Np != N:
        s = jnp.pad(s, ((0, 0), (0, Np - N)))
        t = jnp.pad(t, ((0, 0), (0, Np - N)))

    grid = (Mp // tm, Np // tn, Kp // tk)
    out = pl.pallas_call(
        functools.partial(_mm_scale_shift_kernel, relu=relu),
        grid=grid,
        in_specs=[
            pl.BlockSpec((tm, tk), lambda i, j, k: (i, k)),
            pl.BlockSpec((tk, tn), lambda i, j, k: (k, j)),
            pl.BlockSpec((1, tn), lambda i, j, k: (0, j)),
            pl.BlockSpec((1, tn), lambda i, j, k: (0, j)),
        ],
        out_specs=pl.BlockSpec((tm, tn), lambda i, j, k: (i, j)),
        out_shape=jax.ShapeDtypeStruct((Mp, Np), out_dtype),
        scratch_shapes=[pltpu.VMEM((tm, tn), jnp.float32)],
        compiler_params=pltpu.CompilerParams(
            dimension_semantics=("parallel", "parallel", "arbitrary"),
            vmem_limit_bytes=_VMEM_LIMIT),
    )(xb, wb, s, t)
    if (Mp, Np) != (M, N):
        out = out[:M, :N]
    return out


def _conv1x1(x_nhwc, w, b, bn, relu, out_dtype):
    B, H, W, Cin = x_nhwc.shape
    Cout = w.shape[0]
    s, t = _fold_bn(b, bn, Cout)
    w2 = w.reshape(Cout, Cin).T
    y = _matmul_scale_shift(x_nhwc.reshape(B * H * W, Cin), w2, s, t, relu, out_dtype)
    return y.reshape(B, H, W, Cout)


def _conv_im2col(x_nhwc, w, b, bn, stride, pad, relu, out_dtype):
    """Strided KxK conv via im2col + gridded bf16 matmul (dtransform 5x5 convs;
    stride keeps the im2col blowup modest here)."""
    B, H, W, Cin = x_nhwc.shape
    Cout, _, kh, kw = w.shape
    xp = jnp.pad(x_nhwc, ((0, 0), (pad, pad), (pad, pad), (0, 0)))
    Hp, Wp = H + 2 * pad, W + 2 * pad
    oh = (Hp - kh) // stride + 1
    ow = (Wp - kw) // stride + 1
    cols = []
    for di in range(kh):
        for dj in range(kw):
            cols.append(xp[:, di:di + stride * (oh - 1) + 1:stride,
                              dj:dj + stride * (ow - 1) + 1:stride, :])
    patches = jnp.stack(cols, axis=3)                     # (B, oh, ow, kh*kw, Cin)
    patches = patches.reshape(B * oh * ow, kh * kw * Cin)
    w2 = w.transpose(2, 3, 1, 0).reshape(kh * kw * Cin, Cout)
    s, t = _fold_bn(b, bn, Cout)
    y = _matmul_scale_shift(patches, w2, s, t, relu, out_dtype)
    return y.reshape(B, oh, ow, Cout)


def _conv3x3_s1(x_nhwc, w, b, bn, relu, out_dtype):
    """3x3, stride 1, pad 1 conv as a direct Pallas kernel (no im2col copy)."""
    B, H, W, Cin = x_nhwc.shape
    Cout = w.shape[0]
    xp = jnp.pad(x_nhwc, ((0, 0), (1, 1), (1, 1), (0, 0))).astype(jnp.bfloat16)
    wt = w.transpose(2, 3, 1, 0).reshape(9, Cin, Cout).astype(jnp.bfloat16)
    s, t = _fold_bn(b, bn, Cout)
    out = pl.pallas_call(
        functools.partial(_conv3x3_kernel, relu=relu),
        grid=(B,),
        in_specs=[
            pl.BlockSpec((1, H + 2, W + 2, Cin), lambda i: (i, 0, 0, 0)),
            pl.BlockSpec((9, Cin, Cout), lambda i: (0, 0, 0)),
            pl.BlockSpec((1, Cout), lambda i: (0, 0)),
            pl.BlockSpec((1, Cout), lambda i: (0, 0)),
        ],
        out_specs=pl.BlockSpec((1, H, W, Cout), lambda i: (i, 0, 0, 0)),
        out_shape=jax.ShapeDtypeStruct((B, H, W, Cout), out_dtype),
        compiler_params=pltpu.CompilerParams(
            dimension_semantics=("parallel",),
            vmem_limit_bytes=_VMEM_LIMIT),
    )(xp, wt, s.reshape(1, Cout), t.reshape(1, Cout))
    return out


def _compute_pdf(x01, d_ref, D, dbound, norm_loc, norm_scale):
    BN, _, HW = x01.shape
    return pl.pallas_call(
        functools.partial(_pdf_kernel,
                          d0=float(dbound[0]), d1=float(dbound[1]),
                          dstep=float(dbound[2]),
                          norm_loc=float(norm_loc), norm_scale=float(norm_scale)),
        grid=(BN,),
        in_specs=[
            pl.BlockSpec((1, 2, HW), lambda i: (i, 0, 0)),
            pl.BlockSpec((1, 1, HW), lambda i: (i, 0, 0)),
        ],
        out_specs=pl.BlockSpec((1, D, HW), lambda i: (i, 0, 0)),
        out_shape=jax.ShapeDtypeStruct((BN, D, HW), jnp.float32),
        compiler_params=pltpu.CompilerParams(
            dimension_semantics=("parallel",),
            vmem_limit_bytes=_VMEM_LIMIT),
    )(x01.astype(jnp.float32), d_ref.astype(jnp.float32))


def _bev_scatter(vidx, pdf, feat, nvox):
    """Fused pdf-weighted scatter-add: (nvox, C) = W(nvox, Npix) @ feat(Npix, C)."""
    D, Npix = vidx.shape
    C = feat.shape[1]
    tp = min(512, _round_up(Npix, 128))
    Npp = _round_up(Npix, tp)
    if Npp != Npix:
        padn = Npp - Npix
        vidx = jnp.pad(vidx, ((0, 0), (0, padn)), constant_values=-1)
        pdf = jnp.pad(pdf, ((0, 0), (0, padn)))
        feat = jnp.pad(feat, ((0, padn), (0, 0)))
    tv = 256 if nvox > 256 else nvox
    nvp = _round_up(nvox, tv)

    out = pl.pallas_call(
        _bev_scatter_kernel,
        grid=(nvp // tv, Npp // tp),
        in_specs=[
            pl.BlockSpec((D, tp), lambda i, j: (0, j)),
            pl.BlockSpec((D, tp), lambda i, j: (0, j)),
            pl.BlockSpec((tp, C), lambda i, j: (j, 0)),
        ],
        out_specs=pl.BlockSpec((tv, C), lambda i, j: (i, 0)),
        out_shape=jax.ShapeDtypeStruct((nvp, C), jnp.float32),
        compiler_params=pltpu.CompilerParams(
            dimension_semantics=("parallel", "arbitrary"),
            vmem_limit_bytes=_VMEM_LIMIT),
    )(vidx.astype(jnp.int32), pdf.astype(jnp.float32), feat.astype(jnp.bfloat16))
    return out[:nvox]
    # TODO(synk): for very large Nprime, switch to sorted indices + scalar-prefetch
    # segment offsets instead of the dense (voxel x pixel) weight matrix.


# ----------------------------------------------------------------------------
# Geometry helpers (glue, tiny algebra)
# ----------------------------------------------------------------------------
def gen_dx_bx(xbound, ybound, zbound):
    rows = [xbound, ybound, zbound]
    dx = np.array([r[2] for r in rows], np.float32)
    bx = np.array([r[0] + r[2] / 2.0 for r in rows], np.float32)
    nx = [int((r[1] - r[0]) / r[2]) for r in rows]
    return dx, bx, nx


def project_pixels_to_ground(img_aug, lidar_aug, lidar2image, image_size, ground_height):
    iH, iW = image_size
    xs = jnp.arange(iW, dtype=jnp.float32)
    ys = jnp.arange(iH, dtype=jnp.float32)
    x, y = jnp.meshgrid(xs, ys, indexing='xy')                   # (iH, iW)
    pts = jnp.stack([x, y, jnp.ones_like(x)], axis=-1).reshape(-1, 3).T   # (3, iH*iW)
    pts = pts - img_aug[:3, 3].reshape(3, 1)
    pts = jnp.linalg.inv(img_aug[:3, :3]) @ pts
    pts = pts - lidar2image[:3, 3].reshape(3, 1)
    pts = jnp.linalg.inv(lidar2image[:3, :3]) @ pts
    valid = pts[2] < -1e-6
    scale = ground_height / pts[2]
    pts = pts * scale
    pts = lidar_aug[:3, :3] @ pts + lidar_aug[:3, 3].reshape(3, 1)
    pts = pts.T.reshape(iH, iW, 3)
    valid = valid.reshape(iH, iW)
    return valid, pts


# ----------------------------------------------------------------------------
# GroundLSSTransform
# ----------------------------------------------------------------------------
class GroundLSSTransformPallas:
    def __init__(self, in_channels, out_channels, image_size, feature_size,
                 xbound, ybound, zbound, dbound, downsample=1,
                 depth_norm_loc=20.0, depth_norm_scale=10.0, key=None):
        assert downsample == 1  # TODO(synk): downsample>1 conv stack not implemented (Identity used).
        self.in_channels = in_channels
        self.C = out_channels
        self.image_size = image_size
        self.feature_size = feature_size
        self.xbound, self.ybound, self.zbound, self.dbound = xbound, ybound, zbound, dbound
        self.depth_norm_loc = depth_norm_loc
        self.depth_norm_scale = depth_norm_scale

        self.dx, self.bx, self.nx = gen_dx_bx(xbound, ybound, zbound)
        self.frustum = self._create_frustum()
        self.D = self.frustum.shape[0]

        if key is None:
            key = jax.random.PRNGKey(0)
        self.params = self._init_params(key)

    # --- parameter init (deterministic, synthetic) ---
    def _init_params(self, key):
        def conv(k, cout, cin, kh, kw):
            kw_, kb = jax.random.split(k)
            w = jax.random.normal(kw_, (cout, cin, kh, kw), jnp.float32) / np.sqrt(cin * kh * kw)
            b = 0.01 * jax.random.normal(kb, (cout,), jnp.float32)
            return w, b

        def bn(k, c):
            k1, k2, k3, k4 = jax.random.split(k, 4)
            gamma = 1.0 + 0.1 * jax.random.normal(k1, (c,), jnp.float32)
            beta = 0.05 * jax.random.normal(k2, (c,), jnp.float32)
            mean = 0.05 * jax.random.normal(k3, (c,), jnp.float32)
            var = 0.5 + 0.5 * jax.nn.softplus(jax.random.normal(k4, (c,), jnp.float32))
            return gamma, beta, mean, var

        ks = jax.random.split(key, 12)
        ic, C = self.in_channels, self.C
        p = {}
        p['dt1_w'], p['dt1_b'] = conv(ks[0], 8, 1, 1, 1);   p['dt1_bn'] = bn(ks[1], 8)
        p['dt2_w'], p['dt2_b'] = conv(ks[2], 32, 8, 5, 5);  p['dt2_bn'] = bn(ks[3], 32)
        p['dt3_w'], p['dt3_b'] = conv(ks[4], 64, 32, 5, 5); p['dt3_bn'] = bn(ks[5], 64)
        p['dn1_w'], p['dn1_b'] = conv(ks[6], ic, ic + 64, 3, 3); p['dn1_bn'] = bn(ks[7], ic)
        p['dn2_w'], p['dn2_b'] = conv(ks[8], ic, ic, 3, 3);      p['dn2_bn'] = bn(ks[9], ic)
        p['dn3_w'], p['dn3_b'] = conv(ks[10], 2 + C, ic, 1, 1)
        return p

    def _create_frustum(self):
        iH, iW = self.image_size
        fH, fW = self.feature_size
        ds = jnp.arange(self.dbound[0], self.dbound[1], self.dbound[2], dtype=jnp.float32)
        D = ds.shape[0]
        xs = jnp.linspace(0.0, iW - 1, fW, dtype=jnp.float32)
        ys = jnp.linspace(0.0, iH - 1, fH, dtype=jnp.float32)
        frustum = jnp.stack([
            jnp.broadcast_to(xs[None, None, :], (D, fH, fW)),
            jnp.broadcast_to(ys[None, :, None], (D, fH, fW)),
            jnp.broadcast_to(ds[:, None, None], (D, fH, fW)),
        ], axis=-1)
        return frustum

    # --- geometry (glue) ---
    def get_geometry(self, c2l_rots, c2l_trans, intrins, post_rots, post_trans,
                     extra_rots, extra_trans):
        points = self.frustum[None, None] - post_trans[:, :, None, None, None, :]
        inv_post = jnp.linalg.inv(post_rots)
        points = jnp.einsum('bnij,bndhwj->bndhwi', inv_post, points)
        points = jnp.concatenate([points[..., :2] * points[..., 2:3], points[..., 2:3]], axis=-1)
        combine = jnp.einsum('bnij,bnjk->bnik', c2l_rots, jnp.linalg.inv(intrins))
        points = jnp.einsum('bnij,bndhwj->bndhwi', combine, points)
        points = points + c2l_trans[:, :, None, None, None, :]
        points = jnp.einsum('bij,bndhwj->bndhwi', extra_rots, points)
        points = points + extra_trans[:, None, None, None, None, :]
        return points

    # --- camera features: conv stack + depth-pdf kernel (outer product is fused
    #     into bev_pool, so the (B,N,D,fH,fW,C) tensor is never materialized) ---
    def get_cam_feats(self, x, d):
        B, N, Cin, fH, fW = x.shape
        BN = B * N
        iH, iW = self.image_size
        p = self.params
        C, D = self.C, self.D

        d_nhwc = d.reshape(BN, 1, iH, iW).transpose(0, 2, 3, 1)        # (BN,iH,iW,1)
        x_nhwc = x.reshape(BN, Cin, fH, fW).transpose(0, 2, 3, 1)      # (BN,fH,fW,Cin)

        fd = _conv1x1(d_nhwc, p['dt1_w'], p['dt1_b'], p['dt1_bn'], True, jnp.bfloat16)
        fd = _conv_im2col(fd, p['dt2_w'], p['dt2_b'], p['dt2_bn'], 4, 2, True, jnp.bfloat16)
        fd = _conv_im2col(fd, p['dt3_w'], p['dt3_b'], p['dt3_bn'], 2, 2, True, jnp.bfloat16)

        h = jnp.concatenate([fd, x_nhwc.astype(jnp.bfloat16)], axis=-1)
        h = _conv3x3_s1(h, p['dn1_w'], p['dn1_b'], p['dn1_bn'], True, jnp.bfloat16)
        h = _conv3x3_s1(h, p['dn2_w'], p['dn2_b'], p['dn2_bn'], True, jnp.bfloat16)
        h = _conv1x1(h, p['dn3_w'], p['dn3_b'], None, False, jnp.float32)  # (BN,fH,fW,2+C)

        HW = fH * fW
        x01 = h[..., :2].reshape(BN, HW, 2).transpose(0, 2, 1)          # (BN, 2, HW)
        feat = h[..., 2:2 + C].reshape(BN * HW, C).astype(jnp.bfloat16)  # lane-dense (Npix, C)

        # adaptive_avg_pool2d with exact integer block sizes (iH = 8*fH, iW = 8*fW)
        # TODO(synk): no guard if feature_size does not divide image_size exactly.
        d_ref = d_nhwc[..., 0].reshape(BN, fH, iH // fH, fW, iW // fW).mean(axis=(2, 4))
        d_ref = d_ref.reshape(BN, 1, HW)

        pdf = _compute_pdf(x01, d_ref, D, self.dbound,
                           self.depth_norm_loc, self.depth_norm_scale)   # (BN, D, HW)
        return pdf, feat

    # --- BEV pooling (fused pdf-weighted scatter matmul) ---
    def bev_pool(self, geom, pdf, feat):
        B, N, D, fH, fW, _ = geom.shape
        HW = fH * fW
        dx = jnp.asarray(self.dx)
        bx = jnp.asarray(self.bx)
        coords = ((geom - (bx - dx / 2.0)) / dx).astype(jnp.int32)   # trunc-toward-zero like .long()
        nx0, nx1, nx2 = self.nx
        kept = ((coords[..., 0] >= 0) & (coords[..., 0] < nx0) &
                (coords[..., 1] >= 0) & (coords[..., 1] < nx1) &
                (coords[..., 2] >= 0) & (coords[..., 2] < nx2))
        Z, X, Y = nx2, nx0, nx1
        b_ix = lax.broadcasted_iota(jnp.int32, (B, N, D, fH, fW), 0)
        flat = (b_ix * (Z * X * Y) + coords[..., 2] * (X * Y)
                + coords[..., 0] * Y + coords[..., 1])
        flat = jnp.where(kept, flat, -1).astype(jnp.int32)           # (B,N,D,fH,fW)

        Npix = B * N * HW
        vidx = flat.transpose(2, 0, 1, 3, 4).reshape(D, Npix)
        pdf_t = pdf.reshape(B, N, D, HW).transpose(2, 0, 1, 3).reshape(D, Npix)

        nvox = B * Z * X * Y
        vox = _bev_scatter(vidx, pdf_t, feat, nvox)                  # (nvox, C)
        C = feat.shape[1]
        vox = vox.reshape(B, Z, X, Y, C)
        # torch: (B,Z,X,Y,C) -> (B,C,Z,X,Y) -> cat(unbind(dim=2), 1) == (B, Z*C, X, Y)
        final = jnp.transpose(vox, (0, 1, 4, 2, 3)).reshape(B, Z * C, X, Y)
        return final

    # --- forward ---
    def forward(self, img, points, lidar2image, cam_intrinsic, camera2lidar,
                img_aug_matrix, lidar_aug_matrix, metas):
        intrins = cam_intrinsic[..., :3, :3]
        post_rots = img_aug_matrix[..., :3, :3]
        post_trans = img_aug_matrix[..., :3, 3]
        c2l_rots = camera2lidar[..., :3, :3]
        c2l_trans = camera2lidar[..., :3, 3]
        extra_rots = lidar_aug_matrix[..., :3, :3]
        extra_trans = lidar_aug_matrix[..., :3, 3]

        B = len(points)
        N = img.shape[1]
        iH, iW = self.image_size

        # sparse "ground" depth image from pixel->ground projection (host glue)
        depth_rows = []
        for b in range(B):
            ground_height = -float(metas[b]['lidar2ego'][2][3])
            cams = []
            for c in range(N):
                valid, gp = project_pixels_to_ground(
                    img_aug_matrix[b, c], lidar_aug_matrix[b], lidar2image[b, c],
                    (iH, iW), ground_height)
                d_ground = jnp.sqrt(gp[..., 0] ** 2 + gp[..., 1] ** 2)
                d_ground = jnp.clip(d_ground, self.dbound[0], self.dbound[1])
                cams.append(jnp.where(valid, d_ground, 0.0))
            depth_rows.append(jnp.stack(cams, axis=0))
        depth = jnp.stack(depth_rows, axis=0)[:, :, None].astype(jnp.float32)   # (B,N,1,iH,iW)

        geom = self.get_geometry(c2l_rots, c2l_trans, intrins, post_rots, post_trans,
                                 extra_rots, extra_trans)
        pdf, feat = self.get_cam_feats(img, depth)
        x = self.bev_pool(geom, pdf, feat)
        return x   # downsample == 1 -> Identity


# ----------------------------------------------------------------------------
# main
# ----------------------------------------------------------------------------
if __name__ == "__main__":
    key = jax.random.PRNGKey(0)
    B, N = 2, 2
    in_channels, out_channels = 16, 8
    image_size = (32, 32)          # iH, iW
    feature_size = (4, 4)          # fH, fW  (iH/8, iW/8 — matches dtransform strides)
    xbound = (-8.0, 8.0, 1.0)      # nx0 = 16
    ybound = (-8.0, 8.0, 1.0)      # nx1 = 16
    zbound = (-10.0, 10.0, 20.0)   # nx2 = 1
    dbound = (1.0, 9.0, 1.0)       # D = 8

    k_img, k_pts, k_par = jax.random.split(key, 3)
    img = 0.1 * jax.random.normal(k_img, (B, N, in_channels, *feature_size), jnp.float32)
    pts_keys = jax.random.split(k_pts, B)
    points = [5.0 * jax.random.normal(pk, (64, 4), jnp.float32) for pk in pts_keys]

    def rz(a):
        c, s = np.cos(a), np.sin(a)
        return np.array([[c, -s, 0], [s, c, 0], [0, 0, 1]], np.float32)

    base = np.array([[0, 0, 1], [-1, 0, 0], [0, -1, 0]], np.float32)   # cam -> lidar axes
    cam2lidar = np.zeros((B, N, 4, 4), np.float32)
    intr = np.zeros((B, N, 4, 4), np.float32)
    img_aug = np.zeros((B, N, 4, 4), np.float32)
    lidar_aug = np.zeros((B, 4, 4), np.float32)
    for b in range(B):
        lidar_aug[b] = np.eye(4, dtype=np.float32)
        lidar_aug[b, :3, :3] = rz(0.03 + 0.02 * b)
        lidar_aug[b, :3, 3] = [0.1 * b, -0.05, 0.02]
        for c in range(N):
            T = np.eye(4, dtype=np.float32)
            T[:3, :3] = rz(0.3 * c + 0.1 * b) @ base
            T[:3, 3] = [0.2 + 0.1 * c, -0.1 * b, 1.6]
            cam2lidar[b, c] = T
            K = np.eye(4, dtype=np.float32)
            K[0, 0] = 20.0 + b; K[1, 1] = 20.0 + c; K[0, 2] = 16.0; K[1, 2] = 16.0
            intr[b, c] = K
            A = np.eye(4, dtype=np.float32)
            A[0, 0] = 1.05; A[1, 1] = 0.95; A[0, 3] = 1.0; A[1, 3] = -2.0
            img_aug[b, c] = A
    lidar2image = np.einsum('bcij,bcjk->bcik', intr, np.linalg.inv(cam2lidar)).astype(np.float32)
    metas = [{'lidar2ego': np.array([[1, 0, 0, 0], [0, 1, 0, 0],
                                     [0, 0, 1, 1.8 + 0.1 * b], [0, 0, 0, 1]], np.float32)}
             for b in range(B)]

    model = GroundLSSTransformPallas(in_channels, out_channels, image_size, feature_size,
                                     xbound, ybound, zbound, dbound, key=k_par)
    out = model.forward(img, points,
                        jnp.asarray(lidar2image), jnp.asarray(intr), jnp.asarray(cam2lidar),
                        jnp.asarray(img_aug), jnp.asarray(lidar_aug), metas)
    out = jax.block_until_ready(out)
    assert out.shape == (B, out_channels * model.nx[2], model.nx[0], model.nx[1]), out.shape
    assert bool(jnp.all(jnp.isfinite(out)))
    print("KERNEL_OK")
</pallas_src>

<mosaic_0001>
module attributes {stable_mosaic.version = 11 : i64} {
  func.func @_mm_scale_shift_kernel(%arg0: i32, %arg1: i32, %arg2: i32, %arg3: memref<256x8xbf16, #tpu.memory_space<vmem>>, %arg4: memref<8x8xbf16, #tpu.memory_space<vmem>>, %arg5: memref<1x8xf32, #tpu.memory_space<vmem>>, %arg6: memref<1x8xf32, #tpu.memory_space<vmem>>, %arg7: memref<256x8xbf16, #tpu.memory_space<vmem>>, %arg8: memref<256x8xf32, #tpu.memory_space<vmem>>) attributes {dimension_semantics = [#tpu.dimension_semantics<parallel>, #tpu.dimension_semantics<parallel>, #tpu.dimension_semantics<arbitrary>], iteration_bounds = array<i64: 16, 1, 1>, scalar_prefetch = 0 : i64, scratch_operands = 1 : i64, tpu.core_type = #tpu.core_type<tc>, window_params = [{transform_indices = @transform_0, window_bounds = array<i64: 256, 8>}, {transform_indices = @transform_1, window_bounds = array<i64: 8, 8>}, {transform_indices = @transform_2, window_bounds = array<i64: 1, 8>}, {transform_indices = @transform_3, window_bounds = array<i64: 1, 8>}, {transform_indices = @transform_4, window_bounds = array<i64: 256, 8>}]} {
    %c0_i32 = arith.constant 0 : i32
    %0 = arith.cmpi eq, %arg2, %c0_i32 : i32
    %1 = arith.extui %0 : i1 to i32
    %c0_i32_0 = arith.constant 0 : i32
    %2 = arith.cmpi ne, %1, %c0_i32_0 : i32
    scf.if %2 {
      %cst_10 = arith.constant 0.000000e+00 : f32
      %12 = vector.broadcast %cst_10 : f32 to vector<256x8xf32>
      %c0_11 = arith.constant 0 : index
      %c0_12 = arith.constant 0 : index
      %13 = vector.load %arg8[%c0_11, %c0_12] : memref<256x8xf32, #tpu.memory_space<vmem>>, vector<256x8xf32>
      tpu.vector_store %arg8[%c0_11, %c0_12], %12 {strides = array<i32>} : memref<256x8xf32, #tpu.memory_space<vmem>>, vector<256x8xf32>,
    } else {
    }
    %c0 = arith.constant 0 : index
    %c0_1 = arith.constant 0 : index
    %3 = vector.load %arg8[%c0, %c0_1] : memref<256x8xf32, #tpu.memory_space<vmem>>, vector<256x8xf32>
    %c0_2 = arith.constant 0 : index
    %c0_3 = arith.constant 0 : index
    %4 = vector.load %arg3[%c0_2, %c0_3] : memref<256x8xbf16, #tpu.memory_space<vmem>>, vector<256x8xbf16>
    %c0_4 = arith.constant 0 : index
    %c0_5 = arith.constant 0 : index
    %5 = vector.load %arg4[%c0_4, %c0_5] : memref<8x8xbf16, #tpu.memory_space<vmem>>, vector<8x8xbf16>
    %cst = arith.constant dense<0.000000e+00> : vector<256x8xf32>
    %6 = tpu.matmul %4, %5, %cst {dimension_numbers = #tpu.dot_dimension_numbers<[1], [0], [0], [1], [0, 0, 1, 1], [], []>} : vector<256x8xbf16>, vector<8x8xbf16>, vector<256x8xf32> -> vector<256x8xf32>
    %7 = arith.addf %3, %6 : vector<256x8xf32>
    %c0_6 = arith.constant 0 : index
    %c0_7 = arith.constant 0 : index
    %8 = vector.load %arg8[%c0_6, %c0_7] : memref<256x8xf32, #tpu.memory_space<vmem>>, vector<256x8xf32>
    tpu.vector_store %arg8[%c0_6, %c0_7], %7 {strides = array<i32>} : memref<256x8xf32, #tpu.memory_space<vmem>>, vector<256x8xf32>,
    %c0_i32_8 = arith.constant 0 : i32
    %9 = arith.cmpi eq, %arg2, %c0_i32_8 : i32
    %10 = arith.extui %9 : i1 to i32
    %c0_i32_9 = arith.constant 0 : i32
    %11 = arith.cmpi ne, %10, %c0_i32_9 : i32
    scf.if %11 {
      %c0_10 = arith.constant 0 : index
      %c0_11 = arith.constant 0 : index
      %12 = vector.load %arg8[%c0_10, %c0_11] : memref<256x8xf32, #tpu.memory_space<vmem>>, vector<256x8xf32>
      %c0_12 = arith.constant 0 : index
      %c0_13 = arith.constant 0 : index
      %13 = vector.load %arg5[%c0_12, %c0_13] : memref<1x8xf32, #tpu.memory_space<vmem>>, vector<1x8xf32>
      %14 = vector.broadcast %13 : vector<1x8xf32> to vector<256x8xf32>
      %15 = arith.mulf %12, %14 : vector<256x8xf32>
      %c0_14 = arith.constant 0 : index
      %c0_15 = arith.constant 0 : index
      %16 = vector.load %arg6[%c0_14, %c0_15] : memref<1x8xf32, #tpu.memory_space<vmem>>, vector<1x8xf32>
      %17 = vector.broadcast %16 : vector<1x8xf32> to vector<256x8xf32>
      %18 = arith.addf %15, %17 : vector<256x8xf32>
      %cst_16 = arith.constant 0.000000e+00 : f32
      %19 = vector.broadcast %cst_16 : f32 to vector<256x8xf32>
      %20 = arith.maximumf %18, %19 : vector<256x8xf32>
      %21 = arith.truncf %20 : vector<256x8xf32> to vector<256x8xbf16>
      %c0_17 = arith.constant 0 : index
      %c0_18 = arith.constant 0 : index
      %22 = vector.load %arg7[%c0_17, %c0_18] : memref<256x8xbf16, #tpu.memory_space<vmem>>, vector<256x8xbf16>
      tpu.vector_store %arg7[%c0_17, %c0_18], %21 {strides = array<i32>} : memref<256x8xbf16, #tpu.memory_space<vmem>>, vector<256x8xbf16>,
    } else {
    }
    return
  }
  func.func @transform_0(%arg0: i32, %arg1: i32, %arg2: i32) -> (i32, i32) {
    %c0_i32 = arith.constant 0 : i32
    return %arg0, %arg2 : i32, i32
  }
  func.func @transform_1(%arg0: i32, %arg1: i32, %arg2: i32) -> (i32, i32) {
    %c0_i32 = arith.constant 0 : i32
    return %arg2, %arg1 : i32, i32
  }
  func.func @transform_2(%arg0: i32, %arg1: i32, %arg2: i32) -> (i32, i32) {
    %c0_i32 = arith.constant 0 : i32
    %c0_i32_0 = arith.constant 0 : i32
    return %c0_i32, %arg1 : i32, i32
  }
  func.func @transform_3(%arg0: i32, %arg1: i32, %arg2: i32) -> (i32, i32) {
    %c0_i32 = arith.constant 0 : i32
    %c0_i32_0 = arith.constant 0 : i32
    return %c0_i32, %arg1 : i32, i32
  }
  func.func @transform_4(%arg0: i32, %arg1: i32, %arg2: i32) -> (i32, i32) {
    %c0_i32 = arith.constant 0 : i32
    return %arg0, %arg1 : i32, i32
  }
}

</mosaic_0001>

<llo_original>
// kernel: tpu_custom_call.1
$region0: #{tpu_custom_call.1}
  #allocation0 [shape = 'u32[]', space=smem, size = 0x4, offset = 0x4, fixed_abs, tag = 'smem constant byte address 0x4 - core index']
  #allocation1 [shape = 'u32[144,128]{1,0:T(1,128)}', space=vmem, size = 0x12000, scoped, tag = 'internal scratch']
  #allocation2 [shape = 'f32[256,8]{1,0:T(8,128)}', space=vmem, size = 0x20000, scoped, tag = 'scratch operand']
  %s0 = inlined_call_operand.vmem [shape: bf16[4096,8], index: 0, kind: input, shape index: {}]
  %s1 = inlined_call_operand.vmem [shape: bf16[8,8], index: 1, kind: input, shape index: {}]
  %s2 = inlined_call_operand.vmem [shape: f32[1,8], index: 2, kind: input, shape index: {}]
  %s3 = inlined_call_operand.vmem [shape: f32[1,8], index: 3, kind: input, shape index: {}]
  %s4 = inlined_call_operand.vmem [shape: bf16[4096,8], index: 4, kind: output, shape index: {}]
  %s5 = sld [smem:[#allocation0]]
  $region57: #{tpu_custom_call.1} parent=0
    _
  %s7 = ssub.s32 1, %s5
  %s8 = scalar_select 0, %s7, %s5
  loop: start=0, step=1, limit=18
  $region2: #{tpu_custom_call.1} parent=0 // loop_pre_header
    _
  $region3: #{tpu_custom_call.1} parent=0 // loop_header
    %s10 = sphi 0, %s14
    %p11 = scmp.ge.s32.totalorder %s10, 18
    %s17 = sphi 0, %s36
    %s18 = sphi 0, %s32
    %s19 = sphi 0, %s28
    %s20 = sphi 0, %s17
    %s21 = sphi 0, %s18
    %s22 = sphi 0, %s19
    %s23 = sphi 0, %s20
    %s24 = sphi 0, %s21
    %s25 = sphi 0, %s22
    %s41 = sphi 0, %s43
    %s44 = sphi 0, %s41
    %s45 = sphi 0, %s44
    %s61 = sphi 0, %s45
    %s69 = sphi 0, %s71
    %s72 = sphi 0, %s69
    %s73 = sphi 0, %s72
    %s89 = sphi 0, %s73
    %s95 = sphi 0, %s97
    %s98 = sphi 0, %s95
    %s99 = sphi 0, %s98
    %s115 = sphi 0, %s99
    %s121 = sphi 0, %s123
    %s124 = sphi 0, %s121
    %s125 = sphi 0, %s124
    %s141 = sphi 0, %s125
    %s149 = sphi 0, %s151
    %s152 = sphi 0, %s149
    %s153 = sphi 0, %s152
    %s169 = sphi 0, %s153
  $region4: #{tpu_custom_call.1} parent=0 // loop_header_branch
    %13 = sbr.rel (%p11) target = $region8
  $region5: #{tpu_custom_call.1} parent=0 // loop_body
    %s15 = ssub.s32 %s10, 1
    %s16 = ssub.s32 %s10, 2
    %s26 = sadd.s32 1, %s19
    %p27 = scmp.ge.s32.totalorder %s26, 1
    %s28 = scalar_select %p27, 0, %s26
    %s29 = sadd.s32 1, %s18
    %s30 = scalar_select %p27, %s29, %s18
    %p31 = scmp.ge.s32.totalorder %s30, 1
    %s32 = scalar_select %p31, 0, %s30
    %s33 = sadd.s32 1, %s17
    %s34 = scalar_select %p31, %s33, %s17
    %p35 = scmp.ge.s32.totalorder %s34, 16
    %s36 = scalar_select %p35, 0, %s34
    %s37 = ssub.s32 %s17, %s36
    %s38 = ssub.s32 %s19, %s28
    %s39 = sor.u32 %s37, %s38
    %p40 = scmp.eq.s32.totalorder %s39, 0
    %s42 = sadd.s32 %s41, 1
    %s43 = scalar_select %p40, %s41, %s42
    %p46 = pneg %p40
    %p47 = scmp.eq.s32.totalorder %s10, 15
    %p48 = por %p46, %p47
    %p49 = scmp.ne.s32.totalorder %s41, %s44
    %p50 = scmp.eq.s32.totalorder %s10, 0
    %p51 = por %p49, %p50
    %p52 = scmp.ne.s32.totalorder %s41, %s44
    %p53 = scmp.eq.s32.totalorder %s15, 15
    %p54 = por %p52, %p53
    %p55 = scmp.ne.s32.totalorder %s44, %s45
    %p56 = scmp.eq.s32.totalorder %s15, 0
    %p57 = por %p55, %p56
    %p58 = scmp.ne.s32.totalorder %s44, %s45
    %p59 = scmp.eq.s32.totalorder %s16, 15
    %p60 = por %p58, %p59
    %p62 = scmp.ne.s32.totalorder %s45, %s61
    %p63 = scmp.eq.s32.totalorder %s16, 0
    %p64 = por %p62, %p63
    %s65 = ssub.s32 %s19, %s28
    %s66 = ssub.s32 %s18, %s32
    %s67 = sor.u32 %s65, %s66
    %p68 = scmp.eq.s32.totalorder %s67, 0
    %s70 = sadd.s32 %s69, 1
    %s71 = scalar_select %p68, %s69, %s70
    %p74 = pneg %p68
    %p75 = scmp.eq.s32.totalorder %s10, 15
    %p76 = por %p74, %p75
    %p77 = scmp.ne.s32.totalorder %s69, %s72
    %p78 = scmp.eq.s32.totalorder %s10, 0
    %p79 = por %p77, %p78
    %p80 = scmp.ne.s32.totalorder %s69, %s72
    %p81 = scmp.eq.s32.totalorder %s15, 15
    %p82 = por %p80, %p81
    %p83 = scmp.ne.s32.totalorder %s72, %s73
    %p84 = scmp.eq.s32.totalorder %s15, 0
    %p85 = por %p83, %p84
    %p86 = scmp.ne.s32.totalorder %s72, %s73
    %p87 = scmp.eq.s32.totalorder %s16, 15
    %p88 = por %p86, %p87
    %p90 = scmp.ne.s32.totalorder %s73, %s89
    %p91 = scmp.eq.s32.totalorder %s16, 0
    %p92 = por %p90, %p91
    %s93 = ssub.s32 %s18, %s32
    %p94 = scmp.eq.s32.totalorder %s93, 0
    %s96 = sadd.s32 %s95, 1
    %s97 = scalar_select %p94, %s95, %s96
    %p100 = pneg %p94
    %p101 = scmp.eq.s32.totalorder %s10, 15
    %p102 = por %p100, %p101
    %p103 = scmp.ne.s32.totalorder %s95, %s98
    %p104 = scmp.eq.s32.totalorder %s10, 0
    %p105 = por %p103, %p104
    %p106 = scmp.ne.s32.totalorder %s95, %s98
    %p107 = scmp.eq.s32.totalorder %s15, 15
    %p108 = por %p106, %p107
    %p109 = scmp.ne.s32.totalorder %s98, %s99
    %p110 = scmp.eq.s32.totalorder %s15, 0
    %p111 = por %p109, %p110
    %p112 = scmp.ne.s32.totalorder %s98, %s99
    %p113 = scmp.eq.s32.totalorder %s16, 15
    %p114 = por %p112, %p113
    %p116 = scmp.ne.s32.totalorder %s99, %s115
    %p117 = scmp.eq.s32.totalorder %s16, 0
    %p118 = por %p116, %p117
    %s119 = ssub.s32 %s18, %s32
    %p120 = scmp.eq.s32.totalorder %s119, 0
    %s122 = sadd.s32 %s121, 1
    %s123 = scalar_select %p120, %s121, %s122
    %p126 = pneg %p120
    %p127 = scmp.eq.s32.totalorder %s10, 15
    %p128 = por %p126, %p127
    %p129 = scmp.ne.s32.totalorder %s121, %s124
    %p130 = scmp.eq.s32.totalorder %s10, 0
    %p131 = por %p129, %p130
    %p132 = scmp.ne.s32.totalorder %s121, %s124
    %p133 = scmp.eq.s32.totalorder %s15, 15
    %p134 = por %p132, %p133
    %p135 = scmp.ne.s32.totalorder %s124, %s125
    %p136 = scmp.eq.s32.totalorder %s15, 0
    %p137 = por %p135, %p136
    %p138 = scmp.ne.s32.totalorder %s124, %s125
    %p139 = scmp.eq.s32.totalorder %s16, 15
    %p140 = por %p138, %p139
    %p142 = scmp.ne.s32.totalorder %s125, %s141
    %p143 = scmp.eq.s32.totalorder %s16, 0
    %p144 = por %p142, %p143
    %s145 = ssub.s32 %s17, %s36
    %s146 = ssub.s32 %s18, %s32
    %s147 = sor.u32 %s145, %s146
    %p148 = scmp.eq.s32.totalorder %s147, 0
    %s150 = sadd.s32 %s149, 1
    %s151 = scalar_select %p148, %s149, %s150
    %p154 = pneg %p148
    %p155 = scmp.eq.s32.totalorder %s10, 15
    %p156 = por %p154, %p155
    %p157 = scmp.ne.s32.totalorder %s149, %s152
    %p158 = scmp.eq.s32.totalorder %s10, 0
    %p159 = por %p157, %p158
    %p160 = scmp.ne.s32.totalorder %s149, %s152
    %p161 = scmp.eq.s32.totalorder %s15, 15
    %p162 = por %p160, %p161
    %p163 = scmp.ne.s32.totalorder %s152, %s153
    %p164 = scmp.eq.s32.totalorder %s15, 0
    %p165 = por %p163, %p164
    %p166 = scmp.ne.s32.totalorder %s152, %s153
    %p167 = scmp.eq.s32.totalorder %s16, 15
    %p168 = por %p166, %p167
    %p170 = scmp.ne.s32.totalorder %s153, %s169
    %p171 = scmp.eq.s32.totalorder %s16, 0
    %p172 = por %p170, %p171
    %p173 = scmp.le.s32.totalorder 1, %s10
    %p174 = scmp.lt.s32.totalorder %s10, 17
    %p175 = pnand %p173, %p174
    %p176 = pneg %p175
    // Predicated region
    $region9: #{tpu_custom_call.1} parent=5 // pred_check
      _
    $region10: #{tpu_custom_call.1} parent=5 // pred_check_branch
      %178 = sbr.rel (%p175) target = $region12
    $region11: #{tpu_custom_call.1} parent=5 // pred_region
      %s179 = ssub.s32 %s10, 1
      // Predicated region
      $region13: #{tpu_custom_call.1} parent=11 // pred_check
        %p180 = pneg %p85
      $region14: #{tpu_custom_call.1} parent=11 // pred_check_branch
        %182 = sbr.rel (%p180) target = $region16
      $region15: #{tpu_custom_call.1} parent=11 // pred_region
        %p183 = scmp.lt.s32.totalorder %s22, 0
        %s184 = scalar_select %p183, %s22, 0
        %p185 = scmp.lt.s32.totalorder %s21, 0
        %s186 = scalar_select %p185, %s21, 0
        %s187 = sadd.s32 %s186, %s184
        %s188 = smul.addr %s187, 4
        %s189 = scalar_lea.vmem %s1, %s188
      $region16: #{tpu_custom_call.1} parent=11 // pred_fallthru
        _
      // Predicated region
      $region17: #{tpu_custom_call.1} parent=11 // pred_check
        %p190 = pneg %p111
      $region18: #{tpu_custom_call.1} parent=11 // pred_check_branch
        %192 = sbr.rel (%p190) target = $region20
      $region19: #{tpu_custom_call.1} parent=11 // pred_region
        %p193 = scmp.lt.s32.totalorder %s21, 0
        %s194 = scalar_select %p193, %s21, 0
        %s195 = scalar_lea.vmem %s2, %s194
      $region20: #{tpu_custom_call.1} parent=11 // pred_fallthru
        _
      // Predicated region
      $region21: #{tpu_custom_call.1} parent=11 // pred_check
        %p196 = pneg %p137
      $region22: #{tpu_custom_call.1} parent=11 // pred_check_branch
        %198 = sbr.rel (%p196) target = $region24
      $region23: #{tpu_custom_call.1} parent=11 // pred_region
        %p199 = scmp.lt.s32.totalorder %s21, 0
        %s200 = scalar_select %p199, %s21, 0
        %s201 = scalar_lea.vmem %s3, %s200
      $region24: #{tpu_custom_call.1} parent=11 // pred_fallthru
        _
    $region12: #{tpu_custom_call.1} parent=5 // pred_fallthru
      _
    %p202 = scmp.lt.s32.totalorder %s10, 16
    // Predicated region
    $region25: #{tpu_custom_call.1} parent=5 // pred_check
      %p203 = pneg %p202
    $region26: #{tpu_custom_call.1} parent=5 // pred_check_branch
      %205 = sbr.rel (%p203) target = $region28
    $region27: #{tpu_custom_call.1} parent=5 // pred_region
      // Predicated region
      $region29: #{tpu_custom_call.1} parent=27 // pred_check
        %p206 = pneg %p51
      $region30: #{tpu_custom_call.1} parent=27 // pred_check_branch
        %208 = sbr.rel (%p206) target = $region32
      $region31: #{tpu_custom_call.1} parent=27 // pred_region
        %s209 = smul.u32 32, %s17
        %p210 = scmp.lt.s32.totalorder %s209, 511
        %s211 = scalar_select %p210, %s209, 511
        %p212 = scmp.lt.s32.totalorder %s19, 0
        %s213 = scalar_select %p212, %s19, 0
        %s214 = sadd.s32 %s213, %s211
        %s215 = smul.addr %s214, 4
        %s216 = scalar_lea.vmem %s0, %s215
        %s217 = smul.u32 32, %s17
      $region32: #{tpu_custom_call.1} parent=27 // pred_fallthru
        _
    $region28: #{tpu_custom_call.1} parent=5 // pred_fallthru
      _
    %p218 = scmp.le.s32.totalorder 1, %s10
    %p219 = scmp.lt.s32.totalorder %s10, 17
    %p220 = pnand %p218, %p219
    %p221 = pneg %p220
    // Predicated region
    $region33: #{tpu_custom_call.1} parent=5 // pred_check
      _
    $region34: #{tpu_custom_call.1} parent=5 // pred_check_branch
      %223 = sbr.rel (%p220) target = $region36
    $region35: #{tpu_custom_call.1} parent=5 // pred_region
      %s224 = ssub.s32 %s10, 1
      %s225 = smul.u32 32, %s20
      %p226 = scmp.lt.s32.totalorder %s225, 511
      %s227 = scalar_select %p226, %s225, 511
      %p228 = scmp.lt.s32.totalorder %s22, 0
      %s229 = scalar_select %p228, %s22, 0
      %s230 = sadd.s32 %s229, %s227
      %s231 = smul.addr %s230, 4
      %s232 = scalar_lea.vmem %s0, %s231
      %p233 = pneg %p57
      %p234 = pneg %p54
      %p235 = scmp.lt.s32.totalorder %s22, 0
      %s236 = scalar_select %p235, %s22, 0
      %p237 = scmp.lt.s32.totalorder %s21, 0
      %s238 = scalar_select %p237, %s21, 0
      %s239 = sadd.s32 %s238, %s236
      %s240 = smul.addr %s239, 4
      %s241 = scalar_lea.vmem %s1, %s240
      %p242 = pneg %p85
      %p243 = pneg %p82
      %p244 = scmp.lt.s32.totalorder %s21, 0
      %s245 = scalar_select %p244, %s21, 0
      %s246 = scalar_lea.vmem %s2, %s245
      %p247 = pneg %p111
      %p248 = pneg %p108
      %p249 = scmp.lt.s32.totalorder %s21, 0
      %s250 = scalar_select %p249, %s21, 0
      %s251 = scalar_lea.vmem %s3, %s250
      %p252 = pneg %p137
      %p253 = pneg %p134
      %p254 = pneg %p165
      %p255 = pneg %p162
      %s256 = smul.u32 32, %s20
      %p257 = scmp.lt.s32.totalorder %s256, 511
      %s258 = scalar_select %p257, %s256, 511
      %p259 = scmp.lt.s32.totalorder %s21, 0
      %s260 = scalar_select %p259, %s21, 0
      %s261 = sadd.s32 %s260, %s258
      %s262 = smul.addr %s261, 4
      %s263 = scalar_lea.vmem %s4, %s262
      %s264 = smul.u32 32, %s20
      %p265 = scmp.lt.s32.totalorder %s264, 511
      %s266 = scalar_select %p265, %s264, 511
      %p267 = scmp.lt.s32.totalorder %s22, 0
      %s268 = scalar_select %p267, %s22, 0
      %s269 = sadd.s32 %s268, %s266
      %s270 = smul.addr %s269, 4
      %s271 = scalar_lea.vmem %s0, %s270
      %s272 = smul.u32 32, %s20
      %p273 = scmp.lt.s32.totalorder %s22, 0
      %s274 = scalar_select %p273, %s22, 0
      %p275 = scmp.lt.s32.totalorder %s21, 0
      %s276 = scalar_select %p275, %s21, 0
      %s277 = sadd.s32 %s276, %s274
      %s278 = smul.addr %s277, 4
      %s279 = scalar_lea.vmem %s1, %s278
      %p280 = scmp.lt.s32.totalorder %s21, 0
      %s281 = scalar_select %p280, %s21, 0
      %s282 = scalar_lea.vmem %s2, %s281
      %p283 = scmp.lt.s32.totalorder %s21, 0
      %s284 = scalar_select %p283, %s21, 0
      %s285 = scalar_lea.vmem %s3, %s284
      %s286 = smul.u32 32, %s20
      %p287 = scmp.lt.s32.totalorder %s286, 511
      %s288 = scalar_select %p287, %s286, 511
      %p289 = scmp.lt.s32.totalorder %s21, 0
      %s290 = scalar_select %p289, %s21, 0
      %s291 = sadd.s32 %s290, %s288
      %s292 = smul.addr %s291, 4
      %s293 = scalar_lea.vmem %s4, %s292
      %s294 = smul.u32 32, %s20
      %p296 = scmp.eq.s32.totalorder %s22, 0
      // Predicated region
      $region37: #{tpu_custom_call.1} parent=35 // pred_check
        %p297 = pneg %p296
      $region38: #{tpu_custom_call.1} parent=35 // pred_check_branch
        %299 = sbr.rel (%p297) target = $region40
      $region39: #{tpu_custom_call.1} parent=35 // pred_region
        %vm300 = vcmask 64512
        %301 = vst.msk [vmem:[#allocation2] sm:$0xff] %vm300, 0.0
        %302 = vst.msk [vmem:[#allocation2 + $0x8] sm:$0xff] %vm300, 0.0
        %303 = vst.msk [vmem:[#allocation2 + $0x10] sm:$0xff] %vm300, 0.0
        %304 = vst.msk [vmem:[#allocation2 + $0x18] sm:$0xff] %vm300, 0.0
        %305 = vst.msk [vmem:[#allocation2 + $0x20] sm:$0xff] %vm300, 0.0
        %306 = vst.msk [vmem:[#allocation2 + $0x28] sm:$0xff] %vm300, 0.0
        %307 = vst.msk [vmem:[#allocation2 + $0x30] sm:$0xff] %vm300, 0.0
        %308 = vst.msk [vmem:[#allocation2 + $0x38] sm:$0xff] %vm300, 0.0
        %309 = vst.msk [vmem:[#allocation2 + $0x40] sm:$0xff] %vm300, 0.0
        %310 = vst.msk [vmem:[#allocation2 + $0x48] sm:$0xff] %vm300, 0.0
        %311 = vst.msk [vmem:[#allocation2 + $0x50] sm:$0xff] %vm300, 0.0
        %312 = vst.msk [vmem:[#allocation2 + $0x58] sm:$0xff] %vm300, 0.0
        %313 = vst.msk [vmem:[#allocation2 + $0x60] sm:$0xff] %vm300, 0.0
        %314 = vst.msk [vmem:[#allocation2 + $0x68] sm:$0xff] %vm300, 0.0
        %315 = vst.msk [vmem:[#allocation2 + $0x70] sm:$0xff] %vm300, 0.0
        %316 = vst.msk [vmem:[#allocation2 + $0x78] sm:$0xff] %vm300, 0.0
        %317 = vst.msk [vmem:[#allocation2 + $0x80] sm:$0xff] %vm300, 0.0
        %318 = vst.msk [vmem:[#allocation2 + $0x88] sm:$0xff] %vm300, 0.0
        %319 = vst.msk [vmem:[#allocation2 + $0x90] sm:$0xff] %vm300, 0.0
        %320 = vst.msk [vmem:[#allocation2 + $0x98] sm:$0xff] %vm300, 0.0
        %321 = vst.msk [vmem:[#allocation2 + $0xa0] sm:$0xff] %vm300, 0.0
        %322 = vst.msk [vmem:[#allocation2 + $0xa8] sm:$0xff] %vm300, 0.0
        %323 = vst.msk [vmem:[#allocation2 + $0xb0] sm:$0xff] %vm300, 0.0
        %324 = vst.msk [vmem:[#allocation2 + $0xb8] sm:$0xff] %vm300, 0.0
        %325 = vst.msk [vmem:[#allocation2 + $0xc0] sm:$0xff] %vm300, 0.0
        %326 = vst.msk [vmem:[#allocation2 + $0xc8] sm:$0xff] %vm300, 0.0
        %327 = vst.msk [vmem:[#allocation2 + $0xd0] sm:$0xff] %vm300, 0.0
        %328 = vst.msk [vmem:[#allocation2 + $0xd8] sm:$0xff] %vm300, 0.0
        %329 = vst.msk [vmem:[#allocation2 + $0xe0] sm:$0xff] %vm300, 0.0
        %330 = vst.msk [vmem:[#allocation2 + $0xe8] sm:$0xff] %vm300, 0.0
        %331 = vst.msk [vmem:[#allocation2 + $0xf0] sm:$0xff] %vm300, 0.0
        %332 = vst.msk [vmem:[#allocation2 + $0xf8] sm:$0xff] %vm300, 0.0
      $region40: #{tpu_custom_call.1} parent=35 // pred_fallthru
        _
      %v333 = vld [vmem:[#allocation2] sm:$0xff]
      %v334 = vld [vmem:[#allocation2 + $0x8] sm:$0xff]
      %v335 = vld [vmem:[#allocation2 + $0x10] sm:$0xff]
      %v336 = vld [vmem:[#allocation2 + $0x18] sm:$0xff]
      %v337 = vld [vmem:[#allocation2 + $0x20] sm:$0xff]
      %v338 = vld [vmem:[#allocation2 + $0x28] sm:$0xff]
      %v339 = vld [vmem:[#allocation2 + $0x30] sm:$0xff]
      %v340 = vld [vmem:[#allocation2 + $0x38] sm:$0xff]
      %v341 = vld [vmem:[#allocation2 + $0x40] sm:$0xff]
      %v342 = vld [vmem:[#allocation2 + $0x48] sm:$0xff]
      %v343 = vld [vmem:[#allocation2 + $0x50] sm:$0xff]
      %v344 = vld [vmem:[#allocation2 + $0x58] sm:$0xff]
      %v345 = vld [vmem:[#allocation2 + $0x60] sm:$0xff]
      %v346 = vld [vmem:[#allocation2 + $0x68] sm:$0xff]
      %v347 = vld [vmem:[#allocation2 + $0x70] sm:$0xff]
      %v348 = vld [vmem:[#allocation2 + $0x78] sm:$0xff]
      %v349 = vld [vmem:[#allocation2 + $0x80] sm:$0xff]
      %v350 = vld [vmem:[#allocation2 + $0x88] sm:$0xff]
      %v351 = vld [vmem:[#allocation2 + $0x90] sm:$0xff]
      %v352 = vld [vmem:[#allocation2 + $0x98] sm:$0xff]
      %v353 = vld [vmem:[#allocation2 + $0xa0] sm:$0xff]
      %v354 = vld [vmem:[#allocation2 + $0xa8] sm:$0xff]
      %v355 = vld [vmem:[#allocation2 + $0xb0] sm:$0xff]
      %v356 = vld [vmem:[#allocation2 + $0xb8] sm:$0xff]
      %v357 = vld [vmem:[#allocation2 + $0xc0] sm:$0xff]
      %v358 = vld [vmem:[#allocation2 + $0xc8] sm:$0xff]
      %v359 = vld [vmem:[#allocation2 + $0xd0] sm:$0xff]
      %v360 = vld [vmem:[#allocation2 + $0xd8] sm:$0xff]
      %v361 = vld [vmem:[#allocation2 + $0xe0] sm:$0xff]
      %v362 = vld [vmem:[#allocation2 + $0xe8] sm:$0xff]
      %v363 = vld [vmem:[#allocation2 + $0xf0] sm:$0xff]
      %v364 = vld [vmem:[#allocation2 + $0xf8] sm:$0xff]
      %v365 = vld [vmem:[%s271] sm:$0xf]
      %v366 = vld [vmem:[%s271 + $0x4] sm:$0xf]
      %v367 = vld [vmem:[%s271 + $0x8] sm:$0xf]
      %v368 = vld [vmem:[%s271 + $0xc] sm:$0xf]
      %v369 = vld [vmem:[%s271 + $0x10] sm:$0xf]
      %v370 = vld [vmem:[%s271 + $0x14] sm:$0xf]
      %v371 = vld [vmem:[%s271 + $0x18] sm:$0xf]
      %v372 = vld [vmem:[%s271 + $0x1c] sm:$0xf]
      %v373 = vld [vmem:[%s271 + $0x20] sm:$0xf]
      %v374 = vld [vmem:[%s271 + $0x24] sm:$0xf]
      %v375 = vld [vmem:[%s271 + $0x28] sm:$0xf]
      %v376 = vld [vmem:[%s271 + $0x2c] sm:$0xf]
      %v377 = vld [vmem:[%s271 + $0x30] sm:$0xf]
      %v378 = vld [vmem:[%s271 + $0x34] sm:$0xf]
      %v379 = vld [vmem:[%s271 + $0x38] sm:$0xf]
      %v380 = vld [vmem:[%s271 + $0x3c] sm:$0xf]
      %v381 = vld [vmem:[%s271 + $0x40] sm:$0xf]
      %v382 = vld [vmem:[%s271 + $0x44] sm:$0xf]
      %v383 = vld [vmem:[%s271 + $0x48] sm:$0xf]
      %v384 = vld [vmem:[%s271 + $0x4c] sm:$0xf]
      %v385 = vld [vmem:[%s271 + $0x50] sm:$0xf]
      %v386 = vld [vmem:[%s271 + $0x54] sm:$0xf]
      %v387 = vld [vmem:[%s271 + $0x58] sm:$0xf]
      %v388 = vld [vmem:[%s271 + $0x5c] sm:$0xf]
      %v389 = vld [vmem:[%s271 + $0x60] sm:$0xf]
      %v390 = vld [vmem:[%s271 + $0x64] sm:$0xf]
      %v391 = vld [vmem:[%s271 + $0x68] sm:$0xf]
      %v392 = vld [vmem:[%s271 + $0x6c] sm:$0xf]
      %v393 = vld [vmem:[%s271 + $0x70] sm:$0xf]
      %v394 = vld [vmem:[%s271 + $0x74] sm:$0xf]
      %v395 = vld [vmem:[%s271 + $0x78] sm:$0xf]
      %v396 = vld [vmem:[%s271 + $0x7c] sm:$0xf]
      %v397 = vld [vmem:[%s279] sm:$0xf]
      %v430 = vunpack.c.l.b16 %v365
      %v431 = vunpack.c.l.b16 %v366
      %v432 = vunpack.c.l.b16 %v367
      %v433 = vunpack.c.l.b16 %v368
      %v434 = vunpack.c.l.b16 %v369
      %v435 = vunpack.c.l.b16 %v370
      %v436 = vunpack.c.l.b16 %v371
      %v437 = vunpack.c.l.b16 %v372
      %v438 = vunpack.c.l.b16 %v373
      %v439 = vunpack.c.l.b16 %v374
      %v440 = vunpack.c.l.b16 %v375
      %v441 = vunpack.c.l.b16 %v376
      %v442 = vunpack.c.l.b16 %v377
      %v443 = vunpack.c.l.b16 %v378
      %v444 = vunpack.c.l.b16 %v379
      %v445 = vunpack.c.l.b16 %v380
      %v446 = vunpack.c.l.b16 %v381
      %v447 = vunpack.c.l.b16 %v382
      %v448 = vunpack.c.l.b16 %v383
      %v449 = vunpack.c.l.b16 %v384
      %v450 = vunpack.c.l.b16 %v385
      %v451 = vunpack.c.l.b16 %v386
      %v452 = vunpack.c.l.b16 %v387
      %v453 = vunpack.c.l.b16 %v388
      %v454 = vunpack.c.l.b16 %v389
      %v455 = vunpack.c.l.b16 %v390
      %v456 = vunpack.c.l.b16 %v391
      %v457 = vunpack.c.l.b16 %v392
      %v458 = vunpack.c.l.b16 %v393
      %v459 = vunpack.c.l.b16 %v394
      %v460 = vunpack.c.l.b16 %v395
      %v461 = vunpack.c.l.b16 %v396
      %v462 = vpack.c.b16 %v431, %v430
      %v463 = vpack.c.b16 %v433, %v432
      %v464 = vpack.c.b16 %v435, %v434
      %v465 = vpack.c.b16 %v437, %v436
      %v466 = vpack.c.b16 %v439, %v438
      %v467 = vpack.c.b16 %v441, %v440
      %v468 = vpack.c.b16 %v443, %v442
      %v469 = vpack.c.b16 %v445, %v444
      %v470 = vpack.c.b16 %v447, %v446
      %v471 = vpack.c.b16 %v449, %v448
      %v472 = vpack.c.b16 %v451, %v450
      %v473 = vpack.c.b16 %v453, %v452
      %v474 = vpack.c.b16 %v455, %v454
      %v475 = vpack.c.b16 %v457, %v456
      %v476 = vpack.c.b16 %v459, %v458
      %v477 = vpack.c.b16 %v461, %v460
      %vm478 = vcmask 64512
      %v480 = vsel %vm478, %v462, 0
      %v483 = vsel %vm478, %v463, 0
      %v486 = vsel %vm478, %v464, 0
      %v489 = vsel %vm478, %v465, 0
      %v492 = vsel %vm478, %v466, 0
      %v495 = vsel %vm478, %v467, 0
      %v498 = vsel %vm478, %v468, 0
      %v501 = vsel %vm478, %v469, 0
      %v504 = vsel %vm478, %v470, 0
      %v507 = vsel %vm478, %v471, 0
      %v510 = vsel %vm478, %v472, 0
      %v513 = vsel %vm478, %v473, 0
      %v516 = vsel %vm478, %v474, 0
      %v519 = vsel %vm478, %v475, 0
      %v522 = vsel %vm478, %v476, 0
      %v525 = vsel %vm478, %v477, 0
      %vm527 = vcmask 1043456
      %v529 = vsel %vm527, %v397, 0
      %531 = vmatprep.subr.bf16.mxu0 0
      %532 = vmatpush1.bf16.msra.mxu0 %v529
      %533 = vmatprep.subr.bf16.mxu0 0
      %534 = vmatpush1.bf16.msra.mxu0 0
      %535 = vmatprep.subr.bf16.mxu0 0
      %536 = vmatpush1.bf16.msra.mxu0 0
      %537 = vmatprep.subr.bf16.mxu0 0
      %538 = vmatpush1.bf16.msra.mxu0 0
      %539 = vmatprep.subr.bf16.mxu0 0
      %540 = vmatpush1.bf16.msra.mxu0 0
      %541 = vmatprep.subr.bf16.mxu0 0
      %542 = vmatpush1.bf16.msra.mxu0 0
      %543 = vmatprep.subr.bf16.mxu0 0
      %544 = vmatpush1.bf16.msra.mxu0 0
      %545 = vmatprep.subr.bf16.mxu0 0
      %546 = vmatpush1.bf16.msra.mxu0 0
      %547 = vmatprep.subr.bf16.mxu0 0
      %548 = vmatpush1.bf16.msra.mxu0 0
      %549 = vmatprep.subr.bf16.mxu0 0
      %550 = vmatpush1.bf16.msra.mxu0 0
      %551 = vmatprep.subr.bf16.mxu0 0
      %552 = vmatpush1.bf16.msra.mxu0 0
      %553 = vmatprep.subr.bf16.mxu0 0
      %554 = vmatpush1.bf16.msra.mxu0 0
      %555 = vmatprep.subr.bf16.mxu0 0
      %556 = vmatpush1.bf16.msra.mxu0 0
      %557 = vmatprep.subr.bf16.mxu0 0
      %558 = vmatpush1.bf16.msra.mxu0 0
      %559 = vmatprep.subr.bf16.mxu0 0
      %560 = vmatpush1.bf16.msra.mxu0 0
      %561 = vmatprep.subr.bf16.mxu0 0
      %562 = vmatpush1.bf16.msra.mxu0 0
      %563 = vmatprep.mubr.bf16.mxu0 0
      %564 = vmatmul.mubr.bf16.gmra.mrb[0].mxu0 %v480
      %v565 = vpop.f32.mrb[0].mxu0
      %v566 = vadd.f32 0.0, %v565
      %v567 = vpop.f32.mrb[0].mxu0
      %v568 = vpop.f32.mrb[0].mxu0
      %v569 = vadd.f32 0.0, %v568
      %v570 = vpop.f32.mrb[0].mxu0
      %571 = vmatprep.mubr.bf16.mxu0 0
      %572 = vmatmul.mubr.bf16.gmra.mrb[0].mxu0 %v483
      %v573 = vpop.f32.mrb[0].mxu0
      %v574 = vadd.f32 0.0, %v573
      %v575 = vpop.f32.mrb[0].mxu0
      %v576 = vpop.f32.mrb[0].mxu0
      %v577 = vadd.f32 0.0, %v576
      %v578 = vpop.f32.mrb[0].mxu0
      %579 = vmatprep.mubr.bf16.mxu0 0
      %580 = vmatmul.mubr.bf16.gmra.mrb[0].mxu0 %v486
      %v581 = vpop.f32.mrb[0].mxu0
      %v582 = vadd.f32 0.0, %v581
      %v583 = vpop.f32.mrb[0].mxu0
      %v584 = vpop.f32.mrb[0].mxu0
      %v585 = vadd.f32 0.0, %v584
      %v586 = vpop.f32.mrb[0].mxu0
      %587 = vmatprep.mubr.bf16.mxu0 0
      %588 = vmatmul.mubr.bf16.gmra.mrb[0].mxu0 %v489
      %v589 = vpop.f32.mrb[0].mxu0
      %v590 = vadd.f32 0.0, %v589
      %v591 = vpop.f32.mrb[0].mxu0
      %v592 = vpop.f32.mrb[0].mxu0
      %v593 = vadd.f32 0.0, %v592
      %v594 = vpop.f32.mrb[0].mxu0
      %595 = vmatprep.mubr.bf16.mxu0 0
      %596 = vmatmul.mubr.bf16.gmra.mrb[0].mxu0 %v492
      %v597 = vpop.f32.mrb[0].mxu0
      %v598 = vadd.f32 0.0, %v597
      %v599 = vpop.f32.mrb[0].mxu0
      %v600 = vpop.f32.mrb[0].mxu0
      %v601 = vadd.f32 0.0, %v600
      %v602 = vpop.f32.mrb[0].mxu0
      %603 = vmatprep.mubr.bf16.mxu0 0
      %604 = vmatmul.mubr.bf16.gmra.mrb[0].mxu0 %v495
      %v605 = vpop.f32.mrb[0].mxu0
      %v606 = vadd.f32 0.0, %v605
      %v607 = vpop.f32.mrb[0].mxu0
      %v608 = vpop.f32.mrb[0].mxu0
      %v609 = vadd.f32 0.0, %v608
      %v610 = vpop.f32.mrb[0].mxu0
      %611 = vmatprep.mubr.bf16.mxu0 0
      %612 = vmatmul.mubr.bf16.gmra.mrb[0].mxu0 %v498
      %v613 = vpop.f32.mrb[0].mxu0
      %v614 = vadd.f32 0.0, %v613
      %v615 = vpop.f32.mrb[0].mxu0
      %v616 = vpop.f32.mrb[0].mxu0
      %v617 = vadd.f32 0.0, %v616
      %v618 = vpop.f32.mrb[0].mxu0
      %619 = vmatprep.mubr.bf16.mxu0 0
      %620 = vmatmul.mubr.bf16.gmra.mrb[0].mxu0 %v501
      %v621 = vpop.f32.mrb[0].mxu0
      %v622 = vadd.f32 0.0, %v621
      %v623 = vpop.f32.mrb[0].mxu0
      %v624 = vpop.f32.mrb[0].mxu0
      %v625 = vadd.f32 0.0, %v624
      %v626 = vpop.f32.mrb[0].mxu0
      %627 = vmatprep.mubr.bf16.mxu0 0
      %628 = vmatmul.mubr.bf16.gmra.mrb[0].mxu0 %v504
      %v629 = vpop.f32.mrb[0].mxu0
      %v630 = vadd.f32 0.0, %v629
      %v631 = vpop.f32.mrb[0].mxu0
      %v632 = vpop.f32.mrb[0].mxu0
      %v633 = vadd.f32 0.0, %v632
      %v634 = vpop.f32.mrb[0].mxu0
      %635 = vmatprep.mubr.bf16.mxu0 0
      %636 = vmatmul.mubr.bf16.gmra.mrb[0].mxu0 %v507
      %v637 = vpop.f32.mrb[0].mxu0
      %v638 = vadd.f32 0.0, %v637
      %v639 = vpop.f32.mrb[0].mxu0
      %v640 = vpop.f32.mrb[0].mxu0
      %v641 = vadd.f32 0.0, %v640
      %v642 = vpop.f32.mrb[0].mxu0
      %643 = vmatprep.mubr.bf16.mxu0 0
      %644 = vmatmul.mubr.bf16.gmra.mrb[0].mxu0 %v510
      %v645 = vpop.f32.mrb[0].mxu0
      %v646 = vadd.f32 0.0, %v645
      %v647 = vpop.f32.mrb[0].mxu0
      %v648 = vpop.f32.mrb[0].mxu0
      %v649 = vadd.f32 0.0, %v648
      %v650 = vpop.f32.mrb[0].mxu0
      %651 = vmatprep.mubr.bf16.mxu0 0
      %652 = vmatmul.mubr.bf16.gmra.mrb[0].mxu0 %v513
      %v653 = vpop.f32.mrb[0].mxu0
      %v654 = vadd.f32 0.0, %v653
      %v655 = vpop.f32.mrb[0].mxu0
      %v656 = vpop.f32.mrb[0].mxu0
      %v657 = vadd.f32 0.0, %v656
      %v658 = vpop.f32.mrb[0].mxu0
      %659 = vmatprep.mubr.bf16.mxu0 0
      %660 = vmatmul.mubr.bf16.gmra.mrb[0].mxu0 %v516
      %v661 = vpop.f32.mrb[0].mxu0
      %v662 = vadd.f32 0.0, %v661
      %v663 = vpop.f32.mrb[0].mxu0
      %v664 = vpop.f32.mrb[0].mxu0
      %v665 = vadd.f32 0.0, %v664
      %v666 = vpop.f32.mrb[0].mxu0
      %667 = vmatprep.mubr.bf16.mxu0 0
      %668 = vmatmul.mubr.bf16.gmra.mrb[0].mxu0 %v519
      %v669 = vpop.f32.mrb[0].mxu0
      %v670 = vadd.f32 0.0, %v669
      %v671 = vpop.f32.mrb[0].mxu0
      %v672 = vpop.f32.mrb[0].mxu0
      %v673 = vadd.f32 0.0, %v672
      %v674 = vpop.f32.mrb[0].mxu0
      %675 = vmatprep.mubr.bf16.mxu0 0
      %676 = vmatmul.mubr.bf16.gmra.mrb[0].mxu0 %v522
      %v677 = vpop.f32.mrb[0].mxu0
      %v678 = vadd.f32 0.0, %v677
      %v679 = vpop.f32.mrb[0].mxu0
      %v680 = vpop.f32.mrb[0].mxu0
      %v681 = vadd.f32 0.0, %v680
      %v682 = vpop.f32.mrb[0].mxu0
      %683 = vmatprep.mubr.bf16.mxu0 0
      %684 = vmatmul.mubr.bf16.gmra.mrb[0].mxu0 %v525
      %v685 = vpop.f32.mrb[0].mxu0
      %v686 = vadd.f32 0.0, %v685
      %v687 = vpop.f32.mrb[0].mxu0
      %v688 = vpop.f32.mrb[0].mxu0
      %v689 = vadd.f32 0.0, %v688
      %v690 = vpop.f32.mrb[0].mxu0
      %691 = vdwg.mxu0
      %v692 = vadd.f32 %v333, %v566
      %v693 = vadd.f32 %v334, %v569
      %v694 = vadd.f32 %v335, %v574
      %v695 = vadd.f32 %v336, %v577
      %v696 = vadd.f32 %v337, %v582
      %v697 = vadd.f32 %v338, %v585
      %v698 = vadd.f32 %v339, %v590
      %v699 = vadd.f32 %v340, %v593
      %v700 = vadd.f32 %v341, %v598
      %v701 = vadd.f32 %v342, %v601
      %v702 = vadd.f32 %v343, %v606
      %v703 = vadd.f32 %v344, %v609
      %v704 = vadd.f32 %v345, %v614
      %v705 = vadd.f32 %v346, %v617
      %v706 = vadd.f32 %v347, %v622
      %v707 = vadd.f32 %v348, %v625
      %v708 = vadd.f32 %v349, %v630
      %v709 = vadd.f32 %v350, %v633
      %v710 = vadd.f32 %v351, %v638
      %v711 = vadd.f32 %v352, %v641
      %v712 = vadd.f32 %v353, %v646
      %v713 = vadd.f32 %v354, %v649
      %v714 = vadd.f32 %v355, %v654
      %v715 = vadd.f32 %v356, %v657
      %v716 = vadd.f32 %v357, %v662
      %v717 = vadd.f32 %v358, %v665
      %v718 = vadd.f32 %v359, %v670
      %v719 = vadd.f32 %v360, %v673
      %v720 = vadd.f32 %v361, %v678
      %v721 = vadd.f32 %v362, %v681
      %v722 = vadd.f32 %v363, %v686
      %v723 = vadd.f32 %v364, %v689
      %724 = vst.msk [vmem:[#allocation2] sm:$0xff] %vm478, %v692
      %725 = vst.msk [vmem:[#allocation2 + $0x8] sm:$0xff] %vm478, %v693
      %726 = vst.msk [vmem:[#allocation2 + $0x10] sm:$0xff] %vm478, %v694
      %727 = vst.msk [vmem:[#allocation2 + $0x18] sm:$0xff] %vm478, %v695
      %728 = vst.msk [vmem:[#allocation2 + $0x20] sm:$0xff] %vm478, %v696
      %729 = vst.msk [vmem:[#allocation2 + $0x28] sm:$0xff] %vm478, %v697
      %730 = vst.msk [vmem:[#allocation2 + $0x30] sm:$0xff] %vm478, %v698
      %731 = vst.msk [vmem:[#allocation2 + $0x38] sm:$0xff] %vm478, %v699
      %732 = vst.msk [vmem:[#allocation2 + $0x40] sm:$0xff] %vm478, %v700
      %733 = vst.msk [vmem:[#allocation2 + $0x48] sm:$0xff] %vm478, %v701
      %734 = vst.msk [vmem:[#allocation2 + $0x50] sm:$0xff] %vm478, %v702
      %735 = vst.msk [vmem:[#allocation2 + $0x58] sm:$0xff] %vm478, %v703
      %736 = vst.msk [vmem:[#allocation2 + $0x60] sm:$0xff] %vm478, %v704
      %737 = vst.msk [vmem:[#allocation2 + $0x68] sm:$0xff] %vm478, %v705
      %738 = vst.msk [vmem:[#allocation2 + $0x70] sm:$0xff] %vm478, %v706
      %739 = vst.msk [vmem:[#allocation2 + $0x78] sm:$0xff] %vm478, %v707
      %740 = vst.msk [vmem:[#allocation2 + $0x80] sm:$0xff] %vm478, %v708
      %741 = vst.msk [vmem:[#allocation2 + $0x88] sm:$0xff] %vm478, %v709
      %742 = vst.msk [vmem:[#allocation2 + $0x90] sm:$0xff] %vm478, %v710
      %743 = vst.msk [vmem:[#allocation2 + $0x98] sm:$0xff] %vm478, %v711
      %744 = vst.msk [vmem:[#allocation2 + $0xa0] sm:$0xff] %vm478, %v712
      %745 = vst.msk [vmem:[#allocation2 + $0xa8] sm:$0xff] %vm478, %v713
      %746 = vst.msk [vmem:[#allocation2 + $0xb0] sm:$0xff] %vm478, %v714
      %747 = vst.msk [vmem:[#allocation2 + $0xb8] sm:$0xff] %vm478, %v715
      %748 = vst.msk [vmem:[#allocation2 + $0xc0] sm:$0xff] %vm478, %v716
      %749 = vst.msk [vmem:[#allocation2 + $0xc8] sm:$0xff] %vm478, %v717
      %750 = vst.msk [vmem:[#allocation2 + $0xd0] sm:$0xff] %vm478, %v718
      %751 = vst.msk [vmem:[#allocation2 + $0xd8] sm:$0xff] %vm478, %v719
      %752 = vst.msk [vmem:[#allocation2 + $0xe0] sm:$0xff] %vm478, %v720
      %753 = vst.msk [vmem:[#allocation2 + $0xe8] sm:$0xff] %vm478, %v721
      %754 = vst.msk [vmem:[#allocation2 + $0xf0] sm:$0xff] %vm478, %v722
      %755 = vst.msk [vmem:[#allocation2 + $0xf8] sm:$0xff] %vm478, %v723
      // Predicated region
      $region41: #{tpu_custom_call.1} parent=35 // pred_check
        %p756 = pneg %p296
      $region42: #{tpu_custom_call.1} parent=35 // pred_check_branch
        %758 = sbr.rel (%p756) target = $region44
      $region43: #{tpu_custom_call.1} parent=35 // pred_region
        %v759 = vld [vmem:[#allocation2] sm:$0xff]
        %v760 = vld [vmem:[#allocation2 + $0x8] sm:$0xff]
        %v761 = vld [vmem:[#allocation2 + $0x10] sm:$0xff]
        %v762 = vld [vmem:[#allocation2 + $0x18] sm:$0xff]
        %v763 = vld [vmem:[#allocation2 + $0x20] sm:$0xff]
        %v764 = vld [vmem:[#allocation2 + $0x28] sm:$0xff]
        %v765 = vld [vmem:[#allocation2 + $0x30] sm:$0xff]
        %v766 = vld [vmem:[#allocation2 + $0x38] sm:$0xff]
        %v767 = vld [vmem:[#allocation2 + $0x40] sm:$0xff]
        %v768 = vld [vmem:[#allocation2 + $0x48] sm:$0xff]
        %v769 = vld [vmem:[#allocation2 + $0x50] sm:$0xff]
        %v770 = vld [vmem:[#allocation2 + $0x58] sm:$0xff]
        %v771 = vld [vmem:[#allocation2 + $0x60] sm:$0xff]
        %v772 = vld [vmem:[#allocation2 + $0x68] sm:$0xff]
        %v773 = vld [vmem:[#allocation2 + $0x70] sm:$0xff]
        %v774 = vld [vmem:[#allocation2 + $0x78] sm:$0xff]
        %v775 = vld [vmem:[#allocation2 + $0x80] sm:$0xff]
        %v776 = vld [vmem:[#allocation2 + $0x88] sm:$0xff]
        %v777 = vld [vmem:[#allocation2 + $0x90] sm:$0xff]
        %v778 = vld [vmem:[#allocation2 + $0x98] sm:$0xff]
        %v779 = vld [vmem:[#allocation2 + $0xa0] sm:$0xff]
        %v780 = vld [vmem:[#allocation2 + $0xa8] sm:$0xff]
        %v781 = vld [vmem:[#allocation2 + $0xb0] sm:$0xff]
        %v782 = vld [vmem:[#allocation2 + $0xb8] sm:$0xff]
        %v783 = vld [vmem:[#allocation2 + $0xc0] sm:$0xff]
        %v784 = vld [vmem:[#allocation2 + $0xc8] sm:$0xff]
        %v785 = vld [vmem:[#allocation2 + $0xd0] sm:$0xff]
        %v786 = vld [vmem:[#allocation2 + $0xd8] sm:$0xff]
        %v787 = vld [vmem:[#allocation2 + $0xe0] sm:$0xff]
        %v788 = vld [vmem:[#allocation2 + $0xe8] sm:$0xff]
        %v789 = vld [vmem:[#allocation2 + $0xf0] sm:$0xff]
        %v790 = vld [vmem:[#allocation2 + $0xf8] sm:$0xff]
        %v791 = vld [vmem:[%s282] sm:$0x1]
        %v793 = vlaneseq
        %v794 = vshrl.u32 %v793, 7
        %v795 = vsub.s32 0, %v794
        %v796 = vrot.slane %v791, %v795
        %v798 = vmul.f32 %v759, %v796
        %v799 = vmul.f32 %v760, %v796
        %v800 = vmul.f32 %v761, %v796
        %v801 = vmul.f32 %v762, %v796
        %v802 = vmul.f32 %v763, %v796
        %v803 = vmul.f32 %v764, %v796
        %v804 = vmul.f32 %v765, %v796
        %v805 = vmul.f32 %v766, %v796
        %v806 = vmul.f32 %v767, %v796
        %v807 = vmul.f32 %v768, %v796
        %v808 = vmul.f32 %v769, %v796
        %v809 = vmul.f32 %v770, %v796
        %v810 = vmul.f32 %v771, %v796
        %v811 = vmul.f32 %v772, %v796
        %v812 = vmul.f32 %v773, %v796
        %v813 = vmul.f32 %v774, %v796
        %v814 = vmul.f32 %v775, %v796
        %v815 = vmul.f32 %v776, %v796
        %v816 = vmul.f32 %v777, %v796
        %v817 = vmul.f32 %v778, %v796
        %v818 = vmul.f32 %v779, %v796
        %v819 = vmul.f32 %v780, %v796
        %v820 = vmul.f32 %v781, %v796
        %v821 = vmul.f32 %v782, %v796
        %v822 = vmul.f32 %v783, %v796
        %v823 = vmul.f32 %v784, %v796
        %v824 = vmul.f32 %v785, %v796
        %v825 = vmul.f32 %v786, %v796
        %v826 = vmul.f32 %v787, %v796
        %v827 = vmul.f32 %v788, %v796
        %v828 = vmul.f32 %v789, %v796
        %v829 = vmul.f32 %v790, %v796
        %v830 = vld [vmem:[%s285] sm:$0x1]
        %v832 = vlaneseq
        %v833 = vshrl.u32 %v832, 7
        %v834 = vsub.s32 0, %v833
        %v835 = vrot.slane %v830, %v834
        %v837 = vadd.f32 %v798, %v835
        %v838 = vadd.f32 %v799, %v835
        %v839 = vadd.f32 %v800, %v835
        %v840 = vadd.f32 %v801, %v835
        %v841 = vadd.f32 %v802, %v835
        %v842 = vadd.f32 %v803, %v835
        %v843 = vadd.f32 %v804, %v835
        %v844 = vadd.f32 %v805, %v835
        %v845 = vadd.f32 %v806, %v835
        %v846 = vadd.f32 %v807, %v835
        %v847 = vadd.f32 %v808, %v835
        %v848 = vadd.f32 %v809, %v835
        %v849 = vadd.f32 %v810, %v835
        %v850 = vadd.f32 %v811, %v835
        %v851 = vadd.f32 %v812, %v835
        %v852 = vadd.f32 %v813, %v835
        %v853 = vadd.f32 %v814, %v835
        %v854 = vadd.f32 %v815, %v835
        %v855 = vadd.f32 %v816, %v835
        %v856 = vadd.f32 %v817, %v835
        %v857 = vadd.f32 %v818, %v835
        %v858 = vadd.f32 %v819, %v835
        %v859 = vadd.f32 %v820, %v835
        %v860 = vadd.f32 %v821, %v835
        %v861 = vadd.f32 %v822, %v835
        %v862 = vadd.f32 %v823, %v835
        %v863 = vadd.f32 %v824, %v835
        %v864 = vadd.f32 %v825, %v835
        %v865 = vadd.f32 %v826, %v835
        %v866 = vadd.f32 %v827, %v835
        %v867 = vadd.f32 %v828, %v835
        %v868 = vadd.f32 %v829, %v835
        %v869 = vmax.f32 %v837, 0.0
        %v870 = vmax.f32 %v838, 0.0
        %v871 = vmax.f32 %v839, 0.0
        %v872 = vmax.f32 %v840, 0.0
        %v873 = vmax.f32 %v841, 0.0
        %v874 = vmax.f32 %v842, 0.0
        %v875 = vmax.f32 %v843, 0.0
        %v876 = vmax.f32 %v844, 0.0
        %v877 = vmax.f32 %v845, 0.0
        %v878 = vmax.f32 %v846, 0.0
        %v879 = vmax.f32 %v847, 0.0
        %v880 = vmax.f32 %v848, 0.0
        %v881 = vmax.f32 %v849, 0.0
        %v882 = vmax.f32 %v850, 0.0
        %v883 = vmax.f32 %v851, 0.0
        %v884 = vmax.f32 %v852, 0.0
        %v885 = vmax.f32 %v853, 0.0
        %v886 = vmax.f32 %v854, 0.0
        %v887 = vmax.f32 %v855, 0.0
        %v888 = vmax.f32 %v856, 0.0
        %v889 = vmax.f32 %v857, 0.0
        %v890 = vmax.f32 %v858, 0.0
        %v891 = vmax.f32 %v859, 0.0
        %v892 = vmax.f32 %v860, 0.0
        %v893 = vmax.f32 %v861, 0.0
        %v894 = vmax.f32 %v862, 0.0
        %v895 = vmax.f32 %v863, 0.0
        %v896 = vmax.f32 %v864, 0.0
        %v897 = vmax.f32 %v865, 0.0
        %v898 = vmax.f32 %v866, 0.0
        %v899 = vmax.f32 %v867, 0.0
        %v900 = vmax.f32 %v868, 0.0
        %v901 = vpack.c.bf16 %v870, %v869
        %v902 = vpack.c.bf16 %v872, %v871
        %v903 = vpack.c.bf16 %v874, %v873
        %v904 = vpack.c.bf16 %v876, %v875
        %v905 = vpack.c.bf16 %v878, %v877
        %v906 = vpack.c.bf16 %v880, %v879
        %v907 = vpack.c.bf16 %v882, %v881
        %v908 = vpack.c.bf16 %v884, %v883
        %v909 = vpack.c.bf16 %v886, %v885
        %v910 = vpack.c.bf16 %v888, %v887
        %v911 = vpack.c.bf16 %v890, %v889
        %v912 = vpack.c.bf16 %v892, %v891
        %v913 = vpack.c.bf16 %v894, %v893
        %v914 = vpack.c.bf16 %v896, %v895
        %v915 = vpack.c.bf16 %v898, %v897
        %v916 = vpack.c.bf16 %v900, %v899
        %v933 = vunpack.c.l.b16 %v901
        %v934 = vunpack.c.h.b16 %v901
        %v935 = vunpack.c.l.b16 %v902
        %v936 = vunpack.c.h.b16 %v902
        %v937 = vunpack.c.l.b16 %v903
        %v938 = vunpack.c.h.b16 %v903
        %v939 = vunpack.c.l.b16 %v904
        %v940 = vunpack.c.h.b16 %v904
        %v941 = vunpack.c.l.b16 %v905
        %v942 = vunpack.c.h.b16 %v905
        %v943 = vunpack.c.l.b16 %v906
        %v944 = vunpack.c.h.b16 %v906
        %v945 = vunpack.c.l.b16 %v907
        %v946 = vunpack.c.h.b16 %v907
        %v947 = vunpack.c.l.b16 %v908
        %v948 = vunpack.c.h.b16 %v908
        %v949 = vunpack.c.l.b16 %v909
        %v950 = vunpack.c.h.b16 %v909
        %v951 = vunpack.c.l.b16 %v910
        %v952 = vunpack.c.h.b16 %v910
        %v953 = vunpack.c.l.b16 %v911
        %v954 = vunpack.c.h.b16 %v911
        %v955 = vunpack.c.l.b16 %v912
        %v956 = vunpack.c.h.b16 %v912
        %v957 = vunpack.c.l.b16 %v913
        %v958 = vunpack.c.h.b16 %v913
        %v959 = vunpack.c.l.b16 %v914
        %v960 = vunpack.c.h.b16 %v914
        %v961 = vunpack.c.l.b16 %v915
        %v962 = vunpack.c.h.b16 %v915
        %v963 = vunpack.c.l.b16 %v916
        %v964 = vunpack.c.h.b16 %v916
        %v965 = vpack.c.b16 %v933, %v933
        %v966 = vpack.c.b16 %v934, %v934
        %v967 = vpack.c.b16 %v935, %v935
        %v968 = vpack.c.b16 %v936, %v936
        %v969 = vpack.c.b16 %v937, %v937
        %v970 = vpack.c.b16 %v938, %v938
        %v971 = vpack.c.b16 %v939, %v939
        %v972 = vpack.c.b16 %v940, %v940
        %v973 = vpack.c.b16 %v941, %v941
        %v974 = vpack.c.b16 %v942, %v942
        %v975 = vpack.c.b16 %v943, %v943
        %v976 = vpack.c.b16 %v944, %v944
        %v977 = vpack.c.b16 %v945, %v945
        %v978 = vpack.c.b16 %v946, %v946
        %v979 = vpack.c.b16 %v947, %v947
        %v980 = vpack.c.b16 %v948, %v948
        %v981 = vpack.c.b16 %v949, %v949
        %v982 = vpack.c.b16 %v950, %v950
        %v983 = vpack.c.b16 %v951, %v951
        %v984 = vpack.c.b16 %v952, %v952
        %v985 = vpack.c.b16 %v953, %v953
        %v986 = vpack.c.b16 %v954, %v954
        %v987 = vpack.c.b16 %v955, %v955
        %v988 = vpack.c.b16 %v956, %v956
        %v989 = vpack.c.b16 %v957, %v957
        %v990 = vpack.c.b16 %v958, %v958
        %v991 = vpack.c.b16 %v959, %v959
        %v992 = vpack.c.b16 %v960, %v960
        %v993 = vpack.c.b16 %v961, %v961
        %v994 = vpack.c.b16 %v962, %v962
        %v995 = vpack.c.b16 %v963, %v963
        %v996 = vpack.c.b16 %v964, %v964
        %vm1029 = vcmask 60416
        %1030 = vst.msk [vmem:[%s293] sm:$0xf] %vm1029, %v965
        %1031 = vst.msk [vmem:[%s293 + $0x4] sm:$0xf] %vm1029, %v966
        %1032 = vst.msk [vmem:[%s293 + $0x8] sm:$0xf] %vm1029, %v967
        %1033 = vst.msk [vmem:[%s293 + $0xc] sm:$0xf] %vm1029, %v968
        %1034 = vst.msk [vmem:[%s293 + $0x10] sm:$0xf] %vm1029, %v969
        %1035 = vst.msk [vmem:[%s293 + $0x14] sm:$0xf] %vm1029, %v970
        %1036 = vst.msk [vmem:[%s293 + $0x18] sm:$0xf] %vm1029, %v971
        %1037 = vst.msk [vmem:[%s293 + $0x1c] sm:$0xf] %vm1029, %v972
        %1038 = vst.msk [vmem:[%s293 + $0x20] sm:$0xf] %vm1029, %v973
        %1039 = vst.msk [vmem:[%s293 + $0x24] sm:$0xf] %vm1029, %v974
        %1040 = vst.msk [vmem:[%s293 + $0x28] sm:$0xf] %vm1029, %v975
        %1041 = vst.msk [vmem:[%s293 + $0x2c] sm:$0xf] %vm1029, %v976
        %1042 = vst.msk [vmem:[%s293 + $0x30] sm:$0xf] %vm1029, %v977
        %1043 = vst.msk [vmem:[%s293 + $0x34] sm:$0xf] %vm1029, %v978
        %1044 = vst.msk [vmem:[%s293 + $0x38] sm:$0xf] %vm1029, %v979
        %1045 = vst.msk [vmem:[%s293 + $0x3c] sm:$0xf] %vm1029, %v980
        %1046 = vst.msk [vmem:[%s293 + $0x40] sm:$0xf] %vm1029, %v981
        %1047 = vst.msk [vmem:[%s293 + $0x44] sm:$0xf] %vm1029, %v982
        %1048 = vst.msk [vmem:[%s293 + $0x48] sm:$0xf] %vm1029, %v983
        %1049 = vst.msk [vmem:[%s293 + $0x4c] sm:$0xf] %vm1029, %v984
        %1050 = vst.msk [vmem:[%s293 + $0x50] sm:$0xf] %vm1029, %v985
        %1051 = vst.msk [vmem:[%s293 + $0x54] sm:$0xf] %vm1029, %v986
        %1052 = vst.msk [vmem:[%s293 + $0x58] sm:$0xf] %vm1029, %v987
        %1053 = vst.msk [vmem:[%s293 + $0x5c] sm:$0xf] %vm1029, %v988
        %1054 = vst.msk [vmem:[%s293 + $0x60] sm:$0xf] %vm1029, %v989
        %1055 = vst.msk [vmem:[%s293 + $0x64] sm:$0xf] %vm1029, %v990
        %1056 = vst.msk [vmem:[%s293 + $0x68] sm:$0xf] %vm1029, %v991
        %1057 = vst.msk [vmem:[%s293 + $0x6c] sm:$0xf] %vm1029, %v992
        %1058 = vst.msk [vmem:[%s293 + $0x70] sm:$0xf] %vm1029, %v993
        %1059 = vst.msk [vmem:[%s293 + $0x74] sm:$0xf] %vm1029, %v994
        %1060 = vst.msk [vmem:[%s293 + $0x78] sm:$0xf] %vm1029, %v995
        %1061 = vst.msk [vmem:[%s293 + $0x7c] sm:$0xf] %vm1029, %v996
      $region44: #{tpu_custom_call.1} parent=35 // pred_fallthru
        _
      %s1062 = smul.u32 32, %s20
      %p1063 = scmp.lt.s32.totalorder %s1062, 511
      %s1064 = scalar_select %p1063, %s1062, 511
      %p1065 = scmp.lt.s32.totalorder %s21, 0
      %s1066 = scalar_select %p1065, %s21, 0
      %s1067 = sadd.s32 %s1066, %s1064
      %s1068 = smul.addr %s1067, 4
      %s1069 = scalar_lea.vmem %s4, %s1068
      // Predicated region
      $region45: #{tpu_custom_call.1} parent=35 // pred_check
        %p1070 = pneg %p162
      $region46: #{tpu_custom_call.1} parent=35 // pred_check_branch
        %1072 = sbr.rel (%p1070) target = $region48
      $region47: #{tpu_custom_call.1} parent=35 // pred_region
        %s1073 = smul.u32 32, %s20
      $region48: #{tpu_custom_call.1} parent=35 // pred_fallthru
        _
    $region36: #{tpu_custom_call.1} parent=5 // pred_fallthru
      _
    %p1074 = scmp.le.s32.totalorder 2, %s10
    // Predicated region
    $region49: #{tpu_custom_call.1} parent=5 // pred_check
      %p1075 = pneg %p1074
    $region50: #{tpu_custom_call.1} parent=5 // pred_check_branch
      %1077 = sbr.rel (%p1075) target = $region52
    $region51: #{tpu_custom_call.1} parent=5 // pred_region
      %s1078 = ssub.s32 %s10, 2
      // Predicated region
      $region53: #{tpu_custom_call.1} parent=51 // pred_check
        %p1079 = pneg %p168
      $region54: #{tpu_custom_call.1} parent=51 // pred_check_branch
        %1081 = sbr.rel (%p1079) target = $region56
      $region55: #{tpu_custom_call.1} parent=51 // pred_region
        %s1082 = smul.u32 32, %s23
        %p1083 = scmp.lt.s32.totalorder %s1082, 511
        %s1084 = scalar_select %p1083, %s1082, 511
        %p1085 = scmp.lt.s32.totalorder %s24, 0
        %s1086 = scalar_select %p1085, %s24, 0
        %s1087 = sadd.s32 %s1086, %s1084
        %s1088 = smul.addr %s1087, 4
        %s1089 = scalar_lea.vmem %s4, %s1088
      $region56: #{tpu_custom_call.1} parent=51 // pred_fallthru
        _
    $region52: #{tpu_custom_call.1} parent=5 // pred_fallthru
      _
  $region6: #{tpu_custom_call.1} parent=0 // loop_footer
    %s14 = sadd.s32 1, %s10
  $region7: #{tpu_custom_call.1} parent=0 // loop_footer_branch
    %9 = sbr.rel target = $region3
  $region8: #{tpu_custom_call.1} parent=0 // loop_exit
    _

</llo_original>
